<compile_context>
chip_gen: v6e
topology: v6e:2x2x1
jax: 0.10.0
libtpu: 0.0.40
codegen_flags: <defaults>
</compile_context>

<pallas_src>
import math
from functools import partial

import jax
import jax.numpy as jnp
from jax.experimental import pallas as pl
from jax.experimental.pallas import tpu as pltpu


def _pow_static(x, gamma):
    """x**gamma with integer gamma strength-reduced to multiplies (no EUP)."""
    g = float(gamma)
    if g == 0.0:
        return jnp.ones_like(x)
    if g.is_integer() and 0.0 < g <= 8.0:
        r = x
        for _ in range(int(g) - 1):
            r = r * x
        return r
    return jnp.power(x, g)  # non-integer gamma: exp/log fallback on EUP


def focal_loss_kernel(preds_ref, labels_ref, alpha_ref, out_ref, *, gamma,
                      num_classes):
    """One grid step: a dense (rows, sub) slab of samples, all classes.

    preds_ref : (C, rows, sub) logits
    labels_ref: (rows, sub) int32 class ids (-1 for padding -> zero loss)
    alpha_ref : (C, 1) f32 class weights
    out_ref   : (1, 128) lane-dense per-tile partial sum (unmasked store)
    """
    C = num_classes
    labels = labels_ref[...]                       # (rows, sub) int32
    alpha = alpha_ref[...].astype(jnp.float32)     # (C, 1)

    # Running max over the (tiny, unrolled) class axis — pure VPU, dense vregs.
    m = preds_ref[0].astype(jnp.float32)           # (rows, sub)
    for c in range(1, C):
        m = jnp.maximum(m, preds_ref[c].astype(jnp.float32))

    # Fused log-softmax + gather: never materializes (C, rows, sub) arrays.
    denom = jnp.zeros_like(m)
    s_t = jnp.zeros_like(m)        # shifted logit at the label class
    e_t = jnp.zeros_like(m)        # exp(shifted) at the label class
    a_t = jnp.zeros_like(m)        # alpha at the label class (0 if no match)
    for c in range(C):             # unrolled; fine for the module's small C
        sc = preds_ref[c].astype(jnp.float32) - m
        ec = jnp.exp(sc)
        denom = denom + ec
        sel = labels == c
        s_t = jnp.where(sel, sc, s_t)
        e_t = jnp.where(sel, ec, e_t)
        a_t = jnp.where(sel, alpha[c:c + 1, 0:1], a_t)

    # p_t without a full softmax: one divide instead of an extra EUP exp.
    # (pl.reciprocal(denom, approx=True) is cheaper still if ~1e-3 error is OK.)
    pt = e_t * pl.reciprocal(denom, approx=False)
    logpt = s_t - jnp.log(denom)                   # log p_t
    one_minus_pt = jnp.maximum(1.0 - pt, 0.0)      # clamp: fp can give pt > 1
    focal = _pow_static(one_minus_pt, gamma)
    # Padded / out-of-range labels: a_t == 0 -> zero contribution.
    loss = -(a_t * focal * logpt)                  # (rows, sub)

    out_ref[...] = jnp.broadcast_to(jnp.sum(loss, keepdims=True), out_ref.shape)


def _choose_grid(n, c, itemsize):
    """Pick (tile_elems, num_tiles, rows) for the 1-D 'parallel' grid."""
    rows = {4: 8, 2: 16, 1: 32}.get(int(itemsize), 8)   # dtype sublane tiling
    gran = rows * 128                                    # one dense vreg page
    bytes_per_elem = c * itemsize + 4                    # preds + int32 label
    budget = 4 * 1024 * 1024                             # ~4 MiB HBM input/step
    tile = max(gran, (budget // bytes_per_elem) // gran * gran)
    # Guarantee >= 8 steps for large N: megacore split + DMA/compute overlap.
    min_steps = 8
    if n > min_steps * gran:
        tile = min(tile, pl.cdiv(pl.cdiv(n, min_steps), gran) * gran)
    # Don't blow tiny inputs up to a full-budget tile.
    tile = min(tile, pl.cdiv(n, gran) * gran)
    num_tiles = pl.cdiv(n, tile)
    return tile, num_tiles, rows


def focal_loss_class_major(preds_cm, labels, alpha, gamma=2.0,
                           size_average=True):
    """Core entry: preds_cm is (C, N) class-major logits (no relayout here).

    Use this directly when the producing op can emit class-major activations —
    it avoids the extra HBM relayout pass entirely.
    """
    C, N = preds_cm.shape
    labels = labels.reshape(-1).astype(jnp.int32)
    alpha2 = jnp.asarray(alpha, jnp.float32).reshape(C, 1)

    tile, num_tiles, rows = _choose_grid(N, C, preds_cm.dtype.itemsize)
    n_pad = tile * num_tiles
    sub = tile // rows

    if n_pad > N:
        preds_cm = jnp.pad(preds_cm, ((0, 0), (0, n_pad - N)))
        labels = jnp.pad(labels, (0, n_pad - N), constant_values=-1)

    # Dense (sublane x lane) packing; these reshapes fuse with the producer's
    # relayout (one copy pass total).
    preds_dense = preds_cm.reshape(C, num_tiles * rows, sub)
    labels_dense = labels.reshape(num_tiles * rows, sub)

    cost = pl.CostEstimate(
        flops=int((10 + 6 * C) * n_pad),
        transcendentals=int((C + 2) * n_pad),
        bytes_accessed=int(n_pad * (C * preds_dense.dtype.itemsize + 4)
                           + C * 4 + num_tiles * 128 * 4),
    )

    partials = pl.pallas_call(
        partial(focal_loss_kernel, gamma=float(gamma), num_classes=C),
        out_shape=jax.ShapeDtypeStruct((num_tiles, 128), jnp.float32),
        grid_spec=pltpu.PrefetchScalarGridSpec(
            num_scalar_prefetch=0,
            grid=(num_tiles,),
            in_specs=[
                pl.BlockSpec((C, rows, sub), lambda i: (0, i, 0)),   # preds
                pl.BlockSpec((rows, sub), lambda i: (i, 0)),         # labels
                pl.BlockSpec((C, 1), lambda i: (0, 0)),              # alpha
            ],
            out_specs=pl.BlockSpec((1, 128), lambda i: (i, 0)),
        ),
        compiler_params=pltpu.CompilerParams(
            dimension_semantics=("parallel",),
            vmem_limit_bytes=64 * 1024 * 1024),
        cost_estimate=cost,
    )(preds_dense, labels_dense, alpha2)

    total = jnp.sum(partials[:, 0])
    if size_average:
        return total / jnp.float32(N)
    return total


def focal_loss(preds, labels, alpha, gamma=2.0, size_average=True):
    """Module-compatible entry: preds (..., C) logits, labels (...,) ints.

    Does the single row-major -> class-major relayout here; if the loss is
    evaluated repeatedly on the same activations (or the producer can emit
    class-major), call `focal_loss_class_major` instead and skip it.
    """
    C = preds.shape[-1]
    preds_cm = preds.reshape(-1, C).T            # one relayout pass (fused w/ pad)
    return focal_loss_class_major(preds_cm, labels.reshape(-1), alpha,
                                  gamma=gamma, size_average=size_average)


def _focal_loss_ref(preds, labels, alpha, gamma=2.0, size_average=True):
    """Pure-JAX reference mirroring the PyTorch forward."""
    C = preds.shape[-1]
    p = preds.reshape(-1, C).astype(jnp.float32)
    l = labels.reshape(-1).astype(jnp.int32)
    sm = jax.nn.softmax(p, axis=1)
    logsm = jnp.log(sm)
    pt = jnp.take_along_axis(sm, l[:, None], axis=1)[:, 0]
    logpt = jnp.take_along_axis(logsm, l[:, None], axis=1)[:, 0]
    a = alpha.astype(jnp.float32)[l]
    loss = -a * jnp.power(1.0 - pt, gamma) * logpt
    return jnp.mean(loss) if size_average else jnp.sum(loss)


if __name__ == "__main__":
    key = jax.random.PRNGKey(0)
    k1, k2 = jax.random.split(key)

    num_classes = 3
    alpha_scalar = 0.25

    # Deterministic parameter init matching the module's __init__:
    # alpha[0] = 0.25, alpha[1:] = 0.75
    alpha = jnp.concatenate(
        [jnp.array([alpha_scalar], dtype=jnp.float32),
         jnp.full((num_classes - 1,), 1.0 - alpha_scalar, dtype=jnp.float32)])

    # Small shapes: preds (2, 4, 3) logits, labels (2, 4) class ids.
    preds = jax.random.normal(k1, (2, 4, num_classes), dtype=jnp.float32)
    labels = jax.random.randint(k2, (2, 4), 0, num_classes, dtype=jnp.int32)

    # gamma=2 (default, strength-reduced pow), mean reduction
    out = jax.block_until_ready(
        focal_loss(preds, labels, alpha, gamma=2.0, size_average=True))
    ref = _focal_loss_ref(preds, labels, alpha, gamma=2.0, size_average=True)
    assert jnp.allclose(out, ref, atol=1e-5, rtol=1e-5), (out, ref)

    # gamma=3 (integer unroll), sum reduction
    out = jax.block_until_ready(
        focal_loss(preds, labels, alpha, gamma=3, size_average=False))
    ref = _focal_loss_ref(preds, labels, alpha, gamma=3, size_average=False)
    assert jnp.allclose(out, ref, atol=1e-5, rtol=1e-5), (out, ref)

    # gamma=1.5 (non-integer fallback path, exercises the 1-pt clamp)
    out = jax.block_until_ready(
        focal_loss(preds, labels, alpha, gamma=1.5, size_average=True))
    ref = _focal_loss_ref(preds, labels, alpha, gamma=1.5, size_average=True)
    assert jnp.allclose(out, ref, atol=1e-5, rtol=1e-5), (out, ref)

    # Class-major entry point (skips the wrapper relayout entirely)
    out = jax.block_until_ready(
        focal_loss_class_major(preds.reshape(-1, num_classes).T,
                               labels.reshape(-1), alpha,
                               gamma=2.0, size_average=True))
    ref = _focal_loss_ref(preds, labels, alpha, gamma=2.0, size_average=True)
    assert jnp.allclose(out, ref, atol=1e-5, rtol=1e-5), (out, ref)

    print("KERNEL_OK")
</pallas_src>

<mosaic_0001>
module attributes {stable_mosaic.version = 11 : i64} {
  func.func @focal_loss_kernel(%arg0: i32, %arg1: memref<3x8x128xf32, #tpu.memory_space<vmem>>, %arg2: memref<8x128xi32, #tpu.memory_space<vmem>>, %arg3: memref<3x1xf32, #tpu.memory_space<vmem>>, %arg4: memref<1x128xf32, #tpu.memory_space<vmem>>) attributes {dimension_semantics = [#tpu.dimension_semantics<parallel>], iteration_bounds = array<i64: 1>, scalar_prefetch = 0 : i64, scratch_operands = 0 : i64, tpu.core_type = #tpu.core_type<tc>, window_params = [{transform_indices = @transform_0, window_bounds = array<i64: 3, 8, 128>}, {transform_indices = @transform_1, window_bounds = array<i64: 8, 128>}, {pipeline_mode = #tpu.pipeline_mode<synchronous>, transform_indices = @transform_2, window_bounds = array<i64: 3, 1>}, {transform_indices = @transform_3, window_bounds = array<i64: 1, 128>}]} {
    %c0 = arith.constant 0 : index
    %c0_0 = arith.constant 0 : index
    %0 = vector.load %arg2[%c0, %c0_0] : memref<8x128xi32, #tpu.memory_space<vmem>>, vector<8x128xi32>
    %c0_1 = arith.constant 0 : index
    %c0_2 = arith.constant 0 : index
    %1 = vector.load %arg3[%c0_1, %c0_2] : memref<3x1xf32, #tpu.memory_space<vmem>>, vector<3x1xf32>
    %c0_3 = arith.constant 0 : index
    %c0_4 = arith.constant 0 : index
    %c0_5 = arith.constant 0 : index
    %2 = vector.load %arg1[%c0_3, %c0_4, %c0_5] : memref<3x8x128xf32, #tpu.memory_space<vmem>>, vector<1x8x128xf32>
    %3 = vector.shape_cast %2 : vector<1x8x128xf32> to vector<8x128xf32>
    %c1 = arith.constant 1 : index
    %c0_6 = arith.constant 0 : index
    %c0_7 = arith.constant 0 : index
    %4 = vector.load %arg1[%c1, %c0_6, %c0_7] : memref<3x8x128xf32, #tpu.memory_space<vmem>>, vector<1x8x128xf32>
    %5 = vector.shape_cast %4 : vector<1x8x128xf32> to vector<8x128xf32>
    %6 = arith.maximumf %3, %5 : vector<8x128xf32>
    %c2 = arith.constant 2 : index
    %c0_8 = arith.constant 0 : index
    %c0_9 = arith.constant 0 : index
    %7 = vector.load %arg1[%c2, %c0_8, %c0_9] : memref<3x8x128xf32, #tpu.memory_space<vmem>>, vector<1x8x128xf32>
    %8 = vector.shape_cast %7 : vector<1x8x128xf32> to vector<8x128xf32>
    %9 = arith.maximumf %6, %8 : vector<8x128xf32>
    %cst = arith.constant 0.000000e+00 : f32
    %10 = vector.broadcast %cst : f32 to vector<8x128xf32>
    %cst_10 = arith.constant 0.000000e+00 : f32
    %11 = vector.broadcast %cst_10 : f32 to vector<8x128xf32>
    %cst_11 = arith.constant 0.000000e+00 : f32
    %12 = vector.broadcast %cst_11 : f32 to vector<8x128xf32>
    %cst_12 = arith.constant 0.000000e+00 : f32
    %13 = vector.broadcast %cst_12 : f32 to vector<8x128xf32>
    %c0_13 = arith.constant 0 : index
    %c0_14 = arith.constant 0 : index
    %c0_15 = arith.constant 0 : index
    %14 = vector.load %arg1[%c0_13, %c0_14, %c0_15] : memref<3x8x128xf32, #tpu.memory_space<vmem>>, vector<1x8x128xf32>
    %15 = vector.shape_cast %14 : vector<1x8x128xf32> to vector<8x128xf32>
    %16 = arith.subf %15, %9 : vector<8x128xf32>
    %17 = math.exp %16 : vector<8x128xf32>
    %18 = arith.addf %10, %17 : vector<8x128xf32>
    %c0_i32 = arith.constant 0 : i32
    %19 = vector.broadcast %c0_i32 : i32 to vector<8x128xi32>
    %20 = arith.cmpi eq, %0, %19 : vector<8x128xi32>
    %21 = arith.select %20, %16, %11 : vector<8x128xi1>, vector<8x128xf32>
    %22 = arith.select %20, %17, %12 : vector<8x128xi1>, vector<8x128xf32>
    %23 = vector.extract_strided_slice %1 {offsets = [0, 0], sizes = [1, 1], strides = [1, 1]} : vector<3x1xf32> to vector<1x1xf32>
    %24 = vector.shape_cast %23 : vector<1x1xf32> to vector<1x1xf32>
    %25 = vector.broadcast %24 : vector<1x1xf32> to vector<8x128xf32>
    %26 = arith.select %20, %25, %13 : vector<8x128xi1>, vector<8x128xf32>
    %c1_16 = arith.constant 1 : index
    %c0_17 = arith.constant 0 : index
    %c0_18 = arith.constant 0 : index
    %27 = vector.load %arg1[%c1_16, %c0_17, %c0_18] : memref<3x8x128xf32, #tpu.memory_space<vmem>>, vector<1x8x128xf32>
    %28 = vector.shape_cast %27 : vector<1x8x128xf32> to vector<8x128xf32>
    %29 = arith.subf %28, %9 : vector<8x128xf32>
    %30 = math.exp %29 : vector<8x128xf32>
    %31 = arith.addf %18, %30 : vector<8x128xf32>
    %c1_i32 = arith.constant 1 : i32
    %32 = vector.broadcast %c1_i32 : i32 to vector<8x128xi32>
    %33 = arith.cmpi eq, %0, %32 : vector<8x128xi32>
    %34 = arith.select %33, %29, %21 : vector<8x128xi1>, vector<8x128xf32>
    %35 = arith.select %33, %30, %22 : vector<8x128xi1>, vector<8x128xf32>
    %36 = vector.extract_strided_slice %1 {offsets = [1, 0], sizes = [1, 1], strides = [1, 1]} : vector<3x1xf32> to vector<1x1xf32>
    %37 = vector.shape_cast %36 : vector<1x1xf32> to vector<1x1xf32>
    %38 = vector.broadcast %37 : vector<1x1xf32> to vector<8x128xf32>
    %39 = arith.select %33, %38, %26 : vector<8x128xi1>, vector<8x128xf32>
    %c2_19 = arith.constant 2 : index
    %c0_20 = arith.constant 0 : index
    %c0_21 = arith.constant 0 : index
    %40 = vector.load %arg1[%c2_19, %c0_20, %c0_21] : memref<3x8x128xf32, #tpu.memory_space<vmem>>, vector<1x8x128xf32>
    %41 = vector.shape_cast %40 : vector<1x8x128xf32> to vector<8x128xf32>
    %42 = arith.subf %41, %9 : vector<8x128xf32>
    %43 = math.exp %42 : vector<8x128xf32>
    %44 = arith.addf %31, %43 : vector<8x128xf32>
    %c2_i32 = arith.constant 2 : i32
    %45 = vector.broadcast %c2_i32 : i32 to vector<8x128xi32>
    %46 = arith.cmpi eq, %0, %45 : vector<8x128xi32>
    %47 = arith.select %46, %42, %34 : vector<8x128xi1>, vector<8x128xf32>
    %48 = arith.select %46, %43, %35 : vector<8x128xi1>, vector<8x128xf32>
    %49 = vector.extract_strided_slice %1 {offsets = [2, 0], sizes = [1, 1], strides = [1, 1]} : vector<3x1xf32> to vector<1x1xf32>
    %50 = vector.shape_cast %49 : vector<1x1xf32> to vector<1x1xf32>
    %51 = vector.broadcast %50 : vector<1x1xf32> to vector<8x128xf32>
    %52 = arith.select %46, %51, %39 : vector<8x128xi1>, vector<8x128xf32>
    %53 = tpu.reciprocal %44 : vector<8x128xf32> -> vector<8x128xf32>
    %54 = arith.mulf %48, %53 : vector<8x128xf32>
    %55 = math.log %44 : vector<8x128xf32>
    %56 = arith.subf %47, %55 : vector<8x128xf32>
    %cst_22 = arith.constant 1.000000e+00 : f32
    %57 = vector.broadcast %cst_22 : f32 to vector<8x128xf32>
    %58 = arith.subf %57, %54 : vector<8x128xf32>
    %cst_23 = arith.constant 0.000000e+00 : f32
    %59 = vector.broadcast %cst_23 : f32 to vector<8x128xf32>
    %60 = arith.maximumf %58, %59 : vector<8x128xf32>
    %61 = arith.mulf %60, %60 : vector<8x128xf32>
    %62 = arith.mulf %52, %61 : vector<8x128xf32>
    %63 = arith.mulf %62, %56 : vector<8x128xf32>
    %cst_24 = arith.constant 0.000000e+00 : f32
    %64 = vector.broadcast %cst_24 : f32 to vector<8x128xf32>
    %65 = arith.subf %64, %63 : vector<8x128xf32>
    %66 = vector.shape_cast %65 : vector<8x128xf32> to vector<1x8x128xf32>
    %cst_25 = arith.constant dense<0.000000e+00> : vector<1xf32>
    %67 = vector.multi_reduction <add>, %66, %cst_25 [1, 2] : vector<1x8x128xf32> to vector<1xf32>
    %68 = vector.shape_cast %67 : vector<1xf32> to vector<1x1x1xf32>
    %69 = vector.extract %68[0, 0, 0] : f32 from vector<1x1x1xf32>
    %70 = vector.broadcast %69 : f32 to vector<1x1xf32>
    %71 = vector.shape_cast %70 : vector<1x1xf32> to vector<1x1xf32>
    %72 = vector.broadcast %71 : vector<1x1xf32> to vector<1x128xf32>
    %c0_26 = arith.constant 0 : index
    %c0_27 = arith.constant 0 : index
    %73 = vector.load %arg4[%c0_26, %c0_27] : memref<1x128xf32, #tpu.memory_space<vmem>>, vector<1x128xf32>
    tpu.vector_store %arg4[%c0_26, %c0_27], %72 {strides = array<i32>} : memref<1x128xf32, #tpu.memory_space<vmem>>, vector<1x128xf32>,
    return
  }
  func.func @transform_0(%arg0: i32) -> (i32, i32, i32) {
    %c0_i32 = arith.constant 0 : i32
    %c0_i32_0 = arith.constant 0 : i32
    %c0_i32_1 = arith.constant 0 : i32
    return %c0_i32, %arg0, %c0_i32_0 : i32, i32, i32
  }
  func.func @transform_1(%arg0: i32) -> (i32, i32) {
    %c0_i32 = arith.constant 0 : i32
    %c0_i32_0 = arith.constant 0 : i32
    return %arg0, %c0_i32 : i32, i32
  }
  func.func @transform_2(%arg0: i32) -> (i32, i32) {
    %c0_i32 = arith.constant 0 : i32
    %c0_i32_0 = arith.constant 0 : i32
    %c0_i32_1 = arith.constant 0 : i32
    return %c0_i32, %c0_i32_0 : i32, i32
  }
  func.func @transform_3(%arg0: i32) -> (i32, i32) {
    %c0_i32 = arith.constant 0 : i32
    %c0_i32_0 = arith.constant 0 : i32
    return %arg0, %c0_i32 : i32, i32
  }
}

</mosaic_0001>

<llo_original>
// kernel: tpu_custom_call.1
$region0: #{tpu_custom_call.1}
  #allocation0 [shape = 'u32[]', space=smem, size = 0x4, offset = 0x4, fixed_abs, tag = 'smem constant byte address 0x4 - core index']
  #allocation1 [shape = 'u32[144,128]{1,0:T(1,128)}', space=vmem, size = 0x12000, scoped, tag = 'internal scratch']
  %s0 = inlined_call_operand.hbm [shape: f32[3,8,128], index: 0, kind: input, shape index: {}]
  %s1 = inlined_call_operand.hbm [shape: s32[8,128], index: 1, kind: input, shape index: {}]
  %s2 = inlined_call_operand.vmem [shape: f32[3,1], index: 2, kind: input, shape index: {}]
  %s3 = inlined_call_operand.hbm [shape: f32[1,128], index: 3, kind: output, shape index: {}]
  %s4 = sld [smem:[#allocation0]]
  $region30: #{tpu_custom_call.1} parent=0
    _
  %s6 = ssub.s32 1, %s4
  %s7 = scalar_select 0, %s6, %s4
  $region1: #{tpu_custom_call.1} parent=0
    #allocation2 [shape = 'u8[12288]{0}', space=vmem, size = 0x3000, scoped, tag = 'input window, operand 0, single buffered']
    #allocation3 [shape = 's32[1]{0}', space=sflag, size = 0x4, scoped, tag = 'scoped memory for tpu_custom_call.1']
    #allocation4 [shape = 's32[1]{0}', space=sflag, size = 0x4, scoped, tag = 'scoped memory for tpu_custom_call.1']
    #allocation5 [shape = 'u8[4096]{0}', space=vmem, size = 0x1000, scoped, tag = 'input window, operand 1, single buffered']
    #allocation6 [shape = 's32[1]{0}', space=sflag, size = 0x4, scoped, tag = 'scoped memory for tpu_custom_call.1']
    #allocation7 [shape = 'u8[512]{0}', space=vmem, size = 0x400, scoped, tag = 'output window, operand 0, single buffered']
    %8 = vsyncpa [#allocation3], 0
    %9 = vsyncpa [#allocation6], 0
    %10 = vsyncpa [#allocation4], 0
    // Predicated region
    $region2: #{tpu_custom_call.1} parent=1 // pred_check
      _
    $region3: #{tpu_custom_call.1} parent=1 // pred_check_branch
      %12 = sbr.rel (0) target = $region5
    $region4: #{tpu_custom_call.1} parent=1 // pred_region
      %s14 = ssub.s32 384, 384
      %15 = vsyncadd [#allocation3], %s14
      %s16 = sshll.u32 [#allocation2], 4
      %s17 = int_to_ptr.vmem [resolvable:$true] %s16
      %22 = dma.hbm_to_vmem [thread:$0]  %s0, 384, %s17, [#allocation3], 128, 128, 8
    $region5: #{tpu_custom_call.1} parent=1 // pred_fallthru
      _
    // Predicated region
    $region6: #{tpu_custom_call.1} parent=1 // pred_check
      _
    $region7: #{tpu_custom_call.1} parent=1 // pred_check_branch
      %24 = sbr.rel (0) target = $region9
    $region8: #{tpu_custom_call.1} parent=1 // pred_region
      %s26 = ssub.s32 128, 128
      %27 = vsyncadd [#allocation6], %s26
      %s29 = sshll.u32 [#allocation5], 4
      %s30 = int_to_ptr.vmem [resolvable:$true] %s29
      %32 = dma.hbm_to_vmem [thread:$0]  %s1, 128, %s30, [#allocation6]
    $region9: #{tpu_custom_call.1} parent=1 // pred_fallthru
      _
    // Predicated region
    $region10: #{tpu_custom_call.1} parent=1 // pred_check
      _
    $region11: #{tpu_custom_call.1} parent=1 // pred_check_branch
      %34 = sbr.rel (0) target = $region13
    $region12: #{tpu_custom_call.1} parent=1 // pred_region
      _
    $region13: #{tpu_custom_call.1} parent=1 // pred_fallthru
      _
    // Predicated region
    $region14: #{tpu_custom_call.1} parent=1 // pred_check
      _
    $region15: #{tpu_custom_call.1} parent=1 // pred_check_branch
      %36 = sbr.rel (0) target = $region17
    $region16: #{tpu_custom_call.1} parent=1 // pred_region
      %37 = dma.done [#allocation3], 384
    $region17: #{tpu_custom_call.1} parent=1 // pred_fallthru
      _
    // Predicated region
    $region18: #{tpu_custom_call.1} parent=1 // pred_check
      _
    $region19: #{tpu_custom_call.1} parent=1 // pred_check_branch
      %39 = sbr.rel (0) target = $region21
    $region20: #{tpu_custom_call.1} parent=1 // pred_region
      %40 = dma.done [#allocation6], 128
    $region21: #{tpu_custom_call.1} parent=1 // pred_fallthru
      _
    %v41 = vld [vmem:[#allocation5] sm:$0xff]
    %v42 = vld [vmem:[%s2] sm:$0x7]
    %v43 = vld [vmem:[#allocation2] sm:$0xff]
    %s44 = scalar_lea.vmem [#allocation2], 8
    %v45 = vld [vmem:[%s44] sm:$0xff]
    %v46 = vmax.f32 %v43, %v45
    %s47 = scalar_lea.vmem [#allocation2], 16
    %v48 = vld [vmem:[%s47] sm:$0xff]
    %v49 = vmax.f32 %v46, %v48
    %v50 = vsub.f32 %v43, %v49
    %v51 = vmul.f32 %v50, 1.442695
    %v52 = vpow.pop %v51
    %v53 = vadd.f32 %v52, 0.0
    %vm54 = vcmp.eq.s32.totalorder %v41, 0
    %v55 = vsel %vm54, %v50, 0.0
    %v56 = vsel %vm54, %v52, 0.0
    %s58 = vtos %v42
    %v59 = vstv %s58
    %v61 = vsel %vm54, %v59, 0.0
    %v62 = vsub.f32 %v45, %v49
    %v63 = vmul.f32 %v62, 1.442695
    %v64 = vpow.pop %v63
    %v65 = vadd.f32 %v53, %v64
    %vm66 = vcmp.eq.s32.totalorder %v41, 1
    %v67 = vsel %vm66, %v62, %v55
    %v68 = vsel %vm66, %v64, %v56
    %v69 = vrot.slane %v42, 1
    %s70 = vtos %v69
    %v71 = vstv %s70
    %v73 = vsel %vm66, %v71, %v61
    %v74 = vsub.f32 %v48, %v49
    %v75 = vmul.f32 %v74, 1.442695
    %v76 = vpow.pop %v75
    %v77 = vadd.f32 %v65, %v76
    %vm78 = vcmp.eq.s32.totalorder %v41, 2
    %v79 = vsel %vm78, %v74, %v67
    %v80 = vsel %vm78, %v76, %v68
    %v81 = vrot.slane %v42, 2
    %s82 = vtos %v81
    %v83 = vstv %s82
    %v85 = vsel %vm78, %v83, %v73
    %v86 = vrcp.pop %v77
    %v87 = vmul.f32 %v80, %v86
    %v88 = vlog2.pop %v77
    %v89 = vmul.f32 %v88, 0.6931472
    %v90 = vsub.f32 %v79, %v89
    %v91 = vsub.f32 1.0, %v87
    %v92 = vmax.f32 %v91, 0.0
    %v93 = vmul.f32 %v92, %v92
    %v94 = vmul.f32 %v85, %v93
    %v95 = vmul.f32 %v94, %v90
    %v96 = vsub.f32 0.0, %v95
    %97 = vadd.xlane.f32.xlu0 %v96
    %v98 = vpop.xlane.xlu0 %97
    %v99 = vrot.slane %v98, 4
    %v100 = vadd.f32 %v98, %v99
    %v101 = vrot.slane %v100, 2
    %v102 = vadd.f32 %v100, %v101
    %v103 = vrot.slane %v102, 1
    %v104 = vadd.f32 %v102, %v103
    %s105 = vtos %v104
    %v106 = vstv %s105
    %107 = vst [vmem:[#allocation7] sm:$0x1] %v106
    // Predicated region
    $region22: #{tpu_custom_call.1} parent=1 // pred_check
      _
    $region23: #{tpu_custom_call.1} parent=1 // pred_check_branch
      %109 = sbr.rel (0) target = $region25
    $region24: #{tpu_custom_call.1} parent=1 // pred_region
      %s111 = ssub.s32 16, 16
      %112 = vsyncadd [#allocation4], %s111
      %s114 = sshll.u32 [#allocation7], 4
      %s115 = int_to_ptr.vmem [resolvable:$true] %s114
      %117 = dma.vmem_to_hbm [thread:$0]  %s115, 16, %s3, [#allocation4]
    $region25: #{tpu_custom_call.1} parent=1 // pred_fallthru
      _
    // Predicated region
    $region26: #{tpu_custom_call.1} parent=1 // pred_check
      _
    $region27: #{tpu_custom_call.1} parent=1 // pred_check_branch
      %119 = sbr.rel (0) target = $region29
    $region28: #{tpu_custom_call.1} parent=1 // pred_region
      %120 = dma.done [#allocation4], 16
    $region29: #{tpu_custom_call.1} parent=1 // pred_fallthru
      _
    %121 = vsyncpa [#allocation3], 1
    %122 = vsyncpa [#allocation6], 1
    %123 = vsyncpa [#allocation4], 1

</llo_original>
